<compile_context>
chip_gen: v6e
topology: v6e:2x2x1
jax: 0.10.0
libtpu: 0.0.40
codegen_flags: <defaults>
</compile_context>

<pallas_src>
import functools

import jax
import jax.numpy as jnp
from jax.experimental import pallas as pl
from jax.experimental.pallas import tpu as pltpu


def _round_up(n, m):
    return (n + m - 1) // m * m


def _pick_tile(total, target, align):
    """Largest multiple of `align` that divides `total` and is <= target.

    `total` must itself be a multiple of `align` (worst case returns `align`).
    """
    t = max(align, min(target, total))
    t -= t % align
    while total % t != 0:
        t -= align
    return t


# ----------------------------------------------------------------------------
# Fully-fused SublayerConnection + position-wise FFN kernel
#   grid = (row tiles [parallel], d_ff tiles [arbitrary])
#   j == 0 : LayerNorm(x tile) -> bf16 VMEM scratch;  o_ref <- x + b2
#   every j: o_ref += relu(normed @ W1_j + b1_j) @ W2_j    (f32 accumulation
#            directly into the resident output block; no extra scratch)
# ----------------------------------------------------------------------------
def _fused_slc_ffn_kernel(x_ref, a_ref, b_ref, w1_ref, b1_ref, w2_ref, b2_ref,
                          o_ref, normed_ref, *, eps, n_features, compute_dtype):
    j = pl.program_id(1)

    @pl.when(j == 0)
    def _():
        x = x_ref[...].astype(jnp.float32)                       # (tm, d_model)
        mean = jnp.mean(x, axis=-1, keepdims=True)
        xc = x - mean
        # torch-spec LayerNorm: unbiased std, divide by (std + eps)
        var = jnp.sum(xc * xc, axis=-1, keepdims=True) / (n_features - 1)
        inv = pl.reciprocal(jnp.sqrt(var) + eps, approx=True)    # EUP, ~free
        normed = a_ref[...] * xc * inv + b_ref[...]
        normed_ref[...] = normed.astype(compute_dtype)
        # residual + final bias folded into the accumulator init (f32 output
        # block is resident across the whole j reduction).
        o_ref[...] = x_ref[...] + b2_ref[...]

    h = jnp.dot(normed_ref[...], w1_ref[...],
                preferred_element_type=jnp.float32) + b1_ref[...]   # (tm, tf) f32
    h = jnp.maximum(h, 0.0)                                         # ReLU
    o_ref[...] += jnp.dot(h.astype(compute_dtype), w2_ref[...],
                          preferred_element_type=jnp.float32)


def _fused_vmem_bytes(tm, tf, d_model):
    """Estimated VMEM footprint (double-buffered BlockSpec inputs/outputs)."""
    x = 2 * tm * d_model * 4          # f32 x tile
    w1 = 2 * d_model * tf * 2         # bf16
    b1 = 2 * tf * 4
    w2 = 2 * tf * d_model * 2         # bf16
    b2 = 2 * d_model * 4
    ab = 2 * 2 * d_model * 4          # a_2, b_2
    out = 2 * tm * d_model * 4        # resident f32 output block
    normed = tm * d_model * 2         # bf16 scratch
    return x + w1 + b1 + w2 + b2 + ab + out + normed


def prepare_ffn_params(w1, b1, w2, b2, *, compute_dtype=jnp.bfloat16):
    """One-time parameter prep: pad d_ff to a multiple of 128, cast to bf16.

    Zero-padded d_ff columns produce h == 0 after ReLU and multiply zero rows
    of W2, so they contribute exactly 0.
    """
    d_model, d_ff = w1.shape
    d_ffp = _round_up(d_ff, 128)
    w1p = jnp.pad(w1, ((0, 0), (0, d_ffp - d_ff))).astype(compute_dtype)
    b1p = jnp.pad(b1, (0, d_ffp - d_ff)).reshape(1, d_ffp).astype(jnp.float32)
    w2p = jnp.pad(w2, ((0, d_ffp - d_ff), (0, 0))).astype(compute_dtype)
    b2p = b2.reshape(1, d_model).astype(jnp.float32)
    return (w1p, b1p, w2p, b2p)


def sublayer_connection_fused_ffn(x, a_2, b_2, ffn_params, *, eps=1e-6,
                                  tm=512, tf=512,
                                  compute_dtype=jnp.bfloat16,
                                  vmem_budget_bytes=36 * 1024 * 1024):
    """Fused x + FFN(LayerNorm(x)); x: (batch, seq, d_model)."""
    w1p, b1p, w2p, b2p = ffn_params
    batch, seq, d_model = x.shape
    d_ffp = w1p.shape[1]
    M = batch * seq

    x2 = x.reshape(M, d_model)
    if x2.dtype != jnp.float32:
        x2 = x2.astype(jnp.float32)   # direct o_ref accumulation needs f32 out

    Mp = _round_up(M, 8)
    xp = jnp.pad(x2, ((0, Mp - M), (0, 0))) if Mp != M else x2

    # Tile selection under an explicit VMEM budget (safe on v5e/v6e/v7x).
    tm_t, tf_t = tm, tf
    while True:
        tmc = _pick_tile(Mp, tm_t, 8)
        tfc = _pick_tile(d_ffp, tf_t, 128)
        fp = _fused_vmem_bytes(tmc, tfc, d_model)
        if fp <= vmem_budget_bytes or (tmc == 8 and tfc == 128):
            break
        if tfc > 128:
            tf_t = max(128, tf_t // 2)
        else:
            tm_t = max(8, tm_t // 2)
    tm, tf = tmc, tfc
    # NOTE: on v7x, Mp // tm should be >= 2 for both TensorCores to get work;
    # at the demo size (M=16) there is only one row tile.

    out = pl.pallas_call(
        functools.partial(_fused_slc_ffn_kernel, eps=eps, n_features=d_model,
                          compute_dtype=compute_dtype),
        out_shape=jax.ShapeDtypeStruct((Mp, d_model), jnp.float32),
        grid_spec=pltpu.PrefetchScalarGridSpec(
            num_scalar_prefetch=0,
            grid=(Mp // tm, d_ffp // tf),
            in_specs=[
                pl.BlockSpec((tm, d_model), lambda i, j: (i, 0)),   # x row-tile
                pl.BlockSpec((1, d_model), lambda i, j: (0, 0)),    # a_2
                pl.BlockSpec((1, d_model), lambda i, j: (0, 0)),    # b_2
                pl.BlockSpec((d_model, tf), lambda i, j: (0, j)),   # W1 d_ff-tile
                pl.BlockSpec((1, tf), lambda i, j: (0, j)),         # b1 d_ff-tile
                pl.BlockSpec((tf, d_model), lambda i, j: (j, 0)),   # W2 d_ff-tile
                pl.BlockSpec((1, d_model), lambda i, j: (0, 0)),    # b2
            ],
            out_specs=pl.BlockSpec((tm, d_model), lambda i, j: (i, 0)),
            scratch_shapes=[pltpu.VMEM((tm, d_model), compute_dtype)],
        ),
        compiler_params=pltpu.CompilerParams(
            dimension_semantics=("parallel", "arbitrary"),
            vmem_limit_bytes=max(int(fp * 1.25) + (2 << 20), 16 << 20),
        ),
    )(xp, a_2.reshape(1, d_model), b_2.reshape(1, d_model),
      w1p, b1p, w2p, b2p)

    return out[:M].reshape(batch, seq, d_model).astype(x.dtype)


# ----------------------------------------------------------------------------
# Generic (arbitrary-sublayer) path, matching the PyTorch module's contract.
# ----------------------------------------------------------------------------
def _layernorm_kernel(x_ref, a_ref, b_ref, o_ref, *, eps, n_features):
    x = x_ref[...].astype(jnp.float32)                       # (tm, d_model)
    mean = jnp.mean(x, axis=-1, keepdims=True)
    xc = x - mean
    var = jnp.sum(xc * xc, axis=-1, keepdims=True) / (n_features - 1)
    inv = pl.reciprocal(jnp.sqrt(var) + eps, approx=True)    # EUP, not VPU
    o_ref[...] = (a_ref[...] * xc * inv + b_ref[...]).astype(o_ref.dtype)


def layer_norm(x2, a_2, b_2, *, eps=1e-6, tm=1024, out_dtype=None):
    """x2: (M, d_model) -> (M, d_model)."""
    M, d = x2.shape
    out_dtype = out_dtype or x2.dtype
    Mp = _round_up(M, 8)
    tm = _pick_tile(Mp, tm, 8)
    xp = jnp.pad(x2, ((0, Mp - M), (0, 0))) if Mp != M else x2

    out = pl.pallas_call(
        functools.partial(_layernorm_kernel, eps=eps, n_features=d),
        out_shape=jax.ShapeDtypeStruct((Mp, d), out_dtype),
        grid_spec=pltpu.PrefetchScalarGridSpec(
            num_scalar_prefetch=0,
            grid=(Mp // tm,),
            in_specs=[
                pl.BlockSpec((tm, d), lambda i: (i, 0)),
                pl.BlockSpec((1, d), lambda i: (0, 0)),
                pl.BlockSpec((1, d), lambda i: (0, 0)),
            ],
            out_specs=pl.BlockSpec((tm, d), lambda i: (i, 0)),
        ),
        compiler_params=pltpu.CompilerParams(dimension_semantics=("parallel",)),
    )(xp, a_2.reshape(1, d), b_2.reshape(1, d))
    return out[:M]


def _residual_add_kernel(x_ref, y_ref, o_ref):
    # TODO(synk): training-mode dropout via pltpu.prng_seed + stateful_bernoulli.
    o_ref[...] = (x_ref[...] + y_ref[...]).astype(o_ref.dtype)


def residual_add(x2, y2, *, tm=1024):
    M, d = x2.shape
    Mp = _round_up(M, 8)
    tm = _pick_tile(Mp, tm, 8)
    if Mp != M:
        x2 = jnp.pad(x2, ((0, Mp - M), (0, 0)))
        y2 = jnp.pad(y2, ((0, Mp - M), (0, 0)))

    out = pl.pallas_call(
        _residual_add_kernel,
        out_shape=jax.ShapeDtypeStruct((Mp, d), x2.dtype),
        grid_spec=pltpu.PrefetchScalarGridSpec(
            num_scalar_prefetch=0,
            grid=(Mp // tm,),
            in_specs=[
                pl.BlockSpec((tm, d), lambda i: (i, 0)),
                pl.BlockSpec((tm, d), lambda i: (i, 0)),
            ],
            out_specs=pl.BlockSpec((tm, d), lambda i: (i, 0)),
        ),
        compiler_params=pltpu.CompilerParams(dimension_semantics=("parallel",)),
    )(x2, y2)
    return out[:M]


def sublayer_connection(x, a_2, b_2, sublayer, *, eps=1e-6):
    """Generic path: x + dropout(sublayer(norm(x))), arbitrary JAX sublayer."""
    batch, seq, d_model = x.shape
    x2 = x.reshape(batch * seq, d_model)
    normed = layer_norm(x2, a_2, b_2, eps=eps)      # Pallas LayerNorm
    y2 = sublayer(normed)                           # arbitrary sublayer
    out2 = residual_add(x2, y2)                     # Pallas residual (dropout=id)
    return out2.reshape(batch, seq, d_model)


def _torch_linear_init(key, fan_in, shape_w, shape_b):
    """Deterministic nn.Linear-style init: U(-1/sqrt(fan_in), 1/sqrt(fan_in))."""
    kw, kb = jax.random.split(key)
    bound = 1.0 / jnp.sqrt(fan_in)
    w = jax.random.uniform(kw, shape_w, jnp.float32, -bound, bound)
    b = jax.random.uniform(kb, shape_b, jnp.float32, -bound, bound)
    return w, b


if __name__ == "__main__":
    d_model, d_ff = 32, 64
    batch, seq = 2, 8
    eps = 1e-6

    key = jax.random.PRNGKey(0)
    kx, k1, k2 = jax.random.split(key, 3)

    x = jax.random.normal(kx, (batch, seq, d_model), jnp.float32)

    # LayerNorm parameters (torch init: ones / zeros)
    a_2 = jnp.ones((d_model,), jnp.float32)
    b_2 = jnp.zeros((d_model,), jnp.float32)

    # Demo sublayer: position-wise FFN weights (feature-major)
    w1, b1 = _torch_linear_init(k1, d_model, (d_model, d_ff), (d_ff,))
    w2, b2 = _torch_linear_init(k2, d_ff, (d_ff, d_model), (d_model,))

    # One-time weight prep (pad d_ff, cast to bf16) — not per forward call.
    ffn_params = prepare_ffn_params(w1, b1, w2, b2)

    # 1) fully-fused single-kernel path (LN + FFN + residual in one pallas_call)
    out_fused = jax.block_until_ready(
        sublayer_connection_fused_ffn(x, a_2, b_2, ffn_params, eps=eps))

    # 2) generic path with an arbitrary JAX sublayer (same bf16 math)
    cd = jnp.bfloat16
    def jax_ffn(z):
        h = jnp.maximum(jnp.dot(z.astype(cd), w1.astype(cd),
                                preferred_element_type=jnp.float32) + b1, 0.0)
        return jnp.dot(h.astype(cd), w2.astype(cd),
                       preferred_element_type=jnp.float32) + b2
    out_generic = jax.block_until_ready(
        sublayer_connection(x, a_2, b_2, jax_ffn, eps=eps))

    # pure-JAX reference (torch spec: unbiased std, /(std+eps); same bf16 casts)
    x2 = x.reshape(-1, d_model)
    mean = x2.mean(-1, keepdims=True)
    var = ((x2 - mean) ** 2).sum(-1, keepdims=True) / (d_model - 1)
    normed_ref = a_2 * (x2 - mean) / (jnp.sqrt(var) + eps) + b_2
    h_ref = jnp.maximum(
        jnp.dot(normed_ref.astype(cd), w1.astype(cd),
                preferred_element_type=jnp.float32) + b1, 0.0)
    ffn_ref = jnp.dot(h_ref.astype(cd), w2.astype(cd),
                      preferred_element_type=jnp.float32) + b2
    ref = (x2 + ffn_ref).reshape(batch, seq, d_model)

    assert jnp.allclose(out_fused, ref, atol=1e-2, rtol=1e-2), "fused mismatch"
    assert jnp.allclose(out_generic, ref, atol=1e-2, rtol=1e-2), "generic mismatch"
    print("KERNEL_OK")
</pallas_src>

<mosaic_0001>
module attributes {stable_mosaic.version = 11 : i64} {
  func.func @_fused_slc_ffn_kernel(%arg0: i32, %arg1: i32, %arg2: memref<16x32xf32, #tpu.memory_space<vmem>>, %arg3: memref<1x32xf32, #tpu.memory_space<vmem>>, %arg4: memref<1x32xf32, #tpu.memory_space<vmem>>, %arg5: memref<32x128xbf16, #tpu.memory_space<vmem>>, %arg6: memref<1x128xf32, #tpu.memory_space<vmem>>, %arg7: memref<128x32xbf16, #tpu.memory_space<vmem>>, %arg8: memref<1x32xf32, #tpu.memory_space<vmem>>, %arg9: memref<16x32xf32, #tpu.memory_space<vmem>>, %arg10: memref<16x32xbf16, #tpu.memory_space<vmem>>) attributes {dimension_semantics = [#tpu.dimension_semantics<parallel>, #tpu.dimension_semantics<arbitrary>], iteration_bounds = array<i64: 1, 1>, scalar_prefetch = 0 : i64, scratch_operands = 1 : i64, tpu.core_type = #tpu.core_type<tc>, window_params = [{transform_indices = @transform_0, window_bounds = array<i64: 16, 32>}, {pipeline_mode = #tpu.pipeline_mode<synchronous>, transform_indices = @transform_1, window_bounds = array<i64: 1, 32>}, {pipeline_mode = #tpu.pipeline_mode<synchronous>, transform_indices = @transform_2, window_bounds = array<i64: 1, 32>}, {transform_indices = @transform_3, window_bounds = array<i64: 32, 128>}, {transform_indices = @transform_4, window_bounds = array<i64: 1, 128>}, {transform_indices = @transform_5, window_bounds = array<i64: 128, 32>}, {pipeline_mode = #tpu.pipeline_mode<synchronous>, transform_indices = @transform_6, window_bounds = array<i64: 1, 32>}, {transform_indices = @transform_7, window_bounds = array<i64: 16, 32>}]} {
    %c0_i32 = arith.constant 0 : i32
    %0 = arith.cmpi eq, %arg1, %c0_i32 : i32
    %1 = arith.extui %0 : i1 to i32
    %c0_i32_0 = arith.constant 0 : i32
    %2 = arith.cmpi ne, %1, %c0_i32_0 : i32
    scf.if %2 {
      %c0_14 = arith.constant 0 : index
      %c0_15 = arith.constant 0 : index
      %17 = vector.load %arg2[%c0_14, %c0_15] : memref<16x32xf32, #tpu.memory_space<vmem>>, vector<16x32xf32>
      %cst_16 = arith.constant dense<0.000000e+00> : vector<16xf32>
      %18 = vector.multi_reduction <add>, %17, %cst_16 [1] : vector<16x32xf32> to vector<16xf32>
      %19 = vector.shape_cast %18 : vector<16xf32> to vector<16x1xf32>
      %cst_17 = arith.constant 3.200000e+01 : f32
      %20 = vector.broadcast %cst_17 : f32 to vector<16x1xf32>
      %21 = arith.divf %19, %20 : vector<16x1xf32>
      %22 = vector.broadcast %21 : vector<16x1xf32> to vector<16x32xf32>
      %23 = arith.subf %17, %22 : vector<16x32xf32>
      %24 = arith.mulf %23, %23 : vector<16x32xf32>
      %cst_18 = arith.constant dense<0.000000e+00> : vector<16xf32>
      %25 = vector.multi_reduction <add>, %24, %cst_18 [1] : vector<16x32xf32> to vector<16xf32>
      %26 = vector.shape_cast %25 : vector<16xf32> to vector<16x1xf32>
      %cst_19 = arith.constant 3.100000e+01 : f32
      %27 = vector.broadcast %cst_19 : f32 to vector<16x1xf32>
      %28 = arith.divf %26, %27 : vector<16x1xf32>
      %29 = math.sqrt %28 : vector<16x1xf32>
      %cst_20 = arith.constant 9.99999997E-7 : f32
      %30 = vector.broadcast %cst_20 : f32 to vector<16x1xf32>
      %31 = arith.addf %29, %30 : vector<16x1xf32>
      %32 = tpu.reciprocal %31 {approx = true} : vector<16x1xf32> -> vector<16x1xf32>
      %c0_21 = arith.constant 0 : index
      %c0_22 = arith.constant 0 : index
      %33 = vector.load %arg3[%c0_21, %c0_22] : memref<1x32xf32, #tpu.memory_space<vmem>>, vector<1x32xf32>
      %34 = vector.broadcast %33 : vector<1x32xf32> to vector<16x32xf32>
      %35 = arith.mulf %34, %23 : vector<16x32xf32>
      %36 = vector.broadcast %32 : vector<16x1xf32> to vector<16x32xf32>
      %37 = arith.mulf %35, %36 : vector<16x32xf32>
      %c0_23 = arith.constant 0 : index
      %c0_24 = arith.constant 0 : index
      %38 = vector.load %arg4[%c0_23, %c0_24] : memref<1x32xf32, #tpu.memory_space<vmem>>, vector<1x32xf32>
      %39 = vector.broadcast %38 : vector<1x32xf32> to vector<16x32xf32>
      %40 = arith.addf %37, %39 : vector<16x32xf32>
      %41 = arith.truncf %40 : vector<16x32xf32> to vector<16x32xbf16>
      %c0_25 = arith.constant 0 : index
      %c0_26 = arith.constant 0 : index
      %42 = vector.load %arg10[%c0_25, %c0_26] : memref<16x32xbf16, #tpu.memory_space<vmem>>, vector<16x32xbf16>
      tpu.vector_store %arg10[%c0_25, %c0_26], %41 {strides = array<i32>} : memref<16x32xbf16, #tpu.memory_space<vmem>>, vector<16x32xbf16>,
      %c0_27 = arith.constant 0 : index
      %c0_28 = arith.constant 0 : index
      %43 = vector.load %arg2[%c0_27, %c0_28] : memref<16x32xf32, #tpu.memory_space<vmem>>, vector<16x32xf32>
      %c0_29 = arith.constant 0 : index
      %c0_30 = arith.constant 0 : index
      %44 = vector.load %arg8[%c0_29, %c0_30] : memref<1x32xf32, #tpu.memory_space<vmem>>, vector<1x32xf32>
      %45 = vector.broadcast %44 : vector<1x32xf32> to vector<16x32xf32>
      %46 = arith.addf %43, %45 : vector<16x32xf32>
      %c0_31 = arith.constant 0 : index
      %c0_32 = arith.constant 0 : index
      %47 = vector.load %arg9[%c0_31, %c0_32] : memref<16x32xf32, #tpu.memory_space<vmem>>, vector<16x32xf32>
      tpu.vector_store %arg9[%c0_31, %c0_32], %46 {strides = array<i32>} : memref<16x32xf32, #tpu.memory_space<vmem>>, vector<16x32xf32>,
    } else {
    }
    %c0 = arith.constant 0 : index
    %c0_1 = arith.constant 0 : index
    %3 = vector.load %arg10[%c0, %c0_1] : memref<16x32xbf16, #tpu.memory_space<vmem>>, vector<16x32xbf16>
    %c0_2 = arith.constant 0 : index
    %c0_3 = arith.constant 0 : index
    %4 = vector.load %arg5[%c0_2, %c0_3] : memref<32x128xbf16, #tpu.memory_space<vmem>>, vector<32x128xbf16>
    %cst = arith.constant dense<0.000000e+00> : vector<16x128xf32>
    %5 = tpu.matmul %3, %4, %cst {dimension_numbers = #tpu.dot_dimension_numbers<[1], [0], [0], [1], [0, 0, 1, 1], [], []>} : vector<16x32xbf16>, vector<32x128xbf16>, vector<16x128xf32> -> vector<16x128xf32>
    %c0_4 = arith.constant 0 : index
    %c0_5 = arith.constant 0 : index
    %6 = vector.load %arg6[%c0_4, %c0_5] : memref<1x128xf32, #tpu.memory_space<vmem>>, vector<1x128xf32>
    %7 = vector.broadcast %6 : vector<1x128xf32> to vector<16x128xf32>
    %8 = arith.addf %5, %7 : vector<16x128xf32>
    %cst_6 = arith.constant 0.000000e+00 : f32
    %9 = vector.broadcast %cst_6 : f32 to vector<16x128xf32>
    %10 = arith.maximumf %8, %9 : vector<16x128xf32>
    %c0_7 = arith.constant 0 : index
    %c0_8 = arith.constant 0 : index
    %11 = vector.load %arg9[%c0_7, %c0_8] : memref<16x32xf32, #tpu.memory_space<vmem>>, vector<16x32xf32>
    %12 = arith.truncf %10 : vector<16x128xf32> to vector<16x128xbf16>
    %c0_9 = arith.constant 0 : index
    %c0_10 = arith.constant 0 : index
    %13 = vector.load %arg7[%c0_9, %c0_10] : memref<128x32xbf16, #tpu.memory_space<vmem>>, vector<128x32xbf16>
    %cst_11 = arith.constant dense<0.000000e+00> : vector<16x32xf32>
    %14 = tpu.matmul %12, %13, %cst_11 {dimension_numbers = #tpu.dot_dimension_numbers<[1], [0], [0], [1], [0, 0, 1, 1], [], []>} : vector<16x128xbf16>, vector<128x32xbf16>, vector<16x32xf32> -> vector<16x32xf32>
    %15 = arith.addf %11, %14 : vector<16x32xf32>
    %c0_12 = arith.constant 0 : index
    %c0_13 = arith.constant 0 : index
    %16 = vector.load %arg9[%c0_12, %c0_13] : memref<16x32xf32, #tpu.memory_space<vmem>>, vector<16x32xf32>
    tpu.vector_store %arg9[%c0_12, %c0_13], %15 {strides = array<i32>} : memref<16x32xf32, #tpu.memory_space<vmem>>, vector<16x32xf32>,
    return
  }
  func.func @transform_0(%arg0: i32, %arg1: i32) -> (i32, i32) {
    %c0_i32 = arith.constant 0 : i32
    %c0_i32_0 = arith.constant 0 : i32
    return %arg0, %c0_i32 : i32, i32
  }
  func.func @transform_1(%arg0: i32, %arg1: i32) -> (i32, i32) {
    %c0_i32 = arith.constant 0 : i32
    %c0_i32_0 = arith.constant 0 : i32
    %c0_i32_1 = arith.constant 0 : i32
    return %c0_i32, %c0_i32_0 : i32, i32
  }
  func.func @transform_2(%arg0: i32, %arg1: i32) -> (i32, i32) {
    %c0_i32 = arith.constant 0 : i32
    %c0_i32_0 = arith.constant 0 : i32
    %c0_i32_1 = arith.constant 0 : i32
    return %c0_i32, %c0_i32_0 : i32, i32
  }
  func.func @transform_3(%arg0: i32, %arg1: i32) -> (i32, i32) {
    %c0_i32 = arith.constant 0 : i32
    %c0_i32_0 = arith.constant 0 : i32
    return %c0_i32, %arg1 : i32, i32
  }
  func.func @transform_4(%arg0: i32, %arg1: i32) -> (i32, i32) {
    %c0_i32 = arith.constant 0 : i32
    %c0_i32_0 = arith.constant 0 : i32
    return %c0_i32, %arg1 : i32, i32
  }
  func.func @transform_5(%arg0: i32, %arg1: i32) -> (i32, i32) {
    %c0_i32 = arith.constant 0 : i32
    %c0_i32_0 = arith.constant 0 : i32
    return %arg1, %c0_i32 : i32, i32
  }
  func.func @transform_6(%arg0: i32, %arg1: i32) -> (i32, i32) {
    %c0_i32 = arith.constant 0 : i32
    %c0_i32_0 = arith.constant 0 : i32
    %c0_i32_1 = arith.constant 0 : i32
    return %c0_i32, %c0_i32_0 : i32, i32
  }
  func.func @transform_7(%arg0: i32, %arg1: i32) -> (i32, i32) {
    %c0_i32 = arith.constant 0 : i32
    %c0_i32_0 = arith.constant 0 : i32
    return %arg0, %c0_i32 : i32, i32
  }
}

</mosaic_0001>

<llo_original>
// kernel: tpu_custom_call.1
$region0: #{tpu_custom_call.1}
  #allocation0 [shape = 'u32[]', space=smem, size = 0x4, offset = 0x4, fixed_abs, tag = 'smem constant byte address 0x4 - core index']
  #allocation1 [shape = 'u32[144,128]{1,0:T(1,128)}', space=vmem, size = 0x12000, scoped, tag = 'internal scratch']
  #allocation2 [shape = 'bf16[16,32]{1,0:T(8,128)(2,1)}', space=vmem, size = 0x1000, scoped, tag = 'scratch operand']
  %s0 = inlined_call_operand.vmem [shape: f32[16,32], index: 0, kind: input, shape index: {}]
  %s1 = inlined_call_operand.vmem [shape: f32[1,32], index: 1, kind: input, shape index: {}]
  %s2 = inlined_call_operand.vmem [shape: f32[1,32], index: 2, kind: input, shape index: {}]
  %s3 = inlined_call_operand.vmem [shape: bf16[32,128], index: 3, kind: input, shape index: {}]
  %s4 = inlined_call_operand.vmem [shape: f32[1,128], index: 4, kind: input, shape index: {}]
  %s5 = inlined_call_operand.vmem [shape: bf16[128,32], index: 5, kind: input, shape index: {}]
  %s6 = inlined_call_operand.vmem [shape: f32[1,32], index: 6, kind: input, shape index: {}]
  %s7 = inlined_call_operand.hbm [shape: f32[16,32], index: 7, kind: output, shape index: {}]
  %s8 = sld [smem:[#allocation0]]
  $region42: #{tpu_custom_call.1} parent=0
    _
  %s10 = ssub.s32 1, %s8
  %s11 = scalar_select 0, %s10, %s8
  $region1: #{tpu_custom_call.1} parent=0
    #allocation3 [shape = 'u8[8192]{0}', space=vmem, size = 0x2000, scoped, tag = 'output window, operand 0, single buffered']
    #allocation4 [shape = 's32[1]{0}', space=sflag, size = 0x4, scoped, tag = 'scoped memory for tpu_custom_call.1']
    %12 = vsyncpa [#allocation4], 0
    // Predicated region
    $region2: #{tpu_custom_call.1} parent=1 // pred_check
      _
    $region3: #{tpu_custom_call.1} parent=1 // pred_check_branch
      %14 = sbr.rel (0) target = $region5
    $region4: #{tpu_custom_call.1} parent=1 // pred_region
      _
    $region5: #{tpu_custom_call.1} parent=1 // pred_fallthru
      _
    // Predicated region
    $region6: #{tpu_custom_call.1} parent=1 // pred_check
      _
    $region7: #{tpu_custom_call.1} parent=1 // pred_check_branch
      %16 = sbr.rel (0) target = $region9
    $region8: #{tpu_custom_call.1} parent=1 // pred_region
      _
    $region9: #{tpu_custom_call.1} parent=1 // pred_fallthru
      _
    // Predicated region
    $region10: #{tpu_custom_call.1} parent=1 // pred_check
      _
    $region11: #{tpu_custom_call.1} parent=1 // pred_check_branch
      %18 = sbr.rel (0) target = $region13
    $region12: #{tpu_custom_call.1} parent=1 // pred_region
      _
    $region13: #{tpu_custom_call.1} parent=1 // pred_fallthru
      _
    // Predicated region
    $region14: #{tpu_custom_call.1} parent=1 // pred_check
      _
    $region15: #{tpu_custom_call.1} parent=1 // pred_check_branch
      %20 = sbr.rel (0) target = $region17
    $region16: #{tpu_custom_call.1} parent=1 // pred_region
      _
    $region17: #{tpu_custom_call.1} parent=1 // pred_fallthru
      _
    // Predicated region
    $region18: #{tpu_custom_call.1} parent=1 // pred_check
      _
    $region19: #{tpu_custom_call.1} parent=1 // pred_check_branch
      %22 = sbr.rel (0) target = $region21
    $region20: #{tpu_custom_call.1} parent=1 // pred_region
      _
    $region21: #{tpu_custom_call.1} parent=1 // pred_fallthru
      _
    // Predicated region
    $region22: #{tpu_custom_call.1} parent=1 // pred_check
      _
    $region23: #{tpu_custom_call.1} parent=1 // pred_check_branch
      %24 = sbr.rel (0) target = $region25
    $region24: #{tpu_custom_call.1} parent=1 // pred_region
      _
    $region25: #{tpu_custom_call.1} parent=1 // pred_fallthru
      _
    // Predicated region
    $region26: #{tpu_custom_call.1} parent=1 // pred_check
      _
    $region27: #{tpu_custom_call.1} parent=1 // pred_check_branch
      %26 = sbr.rel (0) target = $region29
    $region28: #{tpu_custom_call.1} parent=1 // pred_region
      _
    $region29: #{tpu_custom_call.1} parent=1 // pred_fallthru
      _
    %p28 = scmp.eq.s32.totalorder 0, 0
    // Predicated region
    $region30: #{tpu_custom_call.1} parent=1 // pred_check
      %p29 = pneg %p28
    $region31: #{tpu_custom_call.1} parent=1 // pred_check_branch
      %31 = sbr.rel (%p29) target = $region33
    $region32: #{tpu_custom_call.1} parent=1 // pred_region
      %v32 = vld [vmem:[%s0] sm:$0xff]
      %v33 = vld [vmem:[%s0 + $0x8] sm:$0xff]
      %vm34 = vcmask 261120
      %v35 = vsel %vm34, %v32, 0.0
      %36 = vadd.xlane.f32.xlu0 %v35
      %v37 = vpop.xlane.xlu0 %36
      %v38 = vsel %vm34, %v33, 0.0
      %39 = vadd.xlane.f32.xlu0 %v38
      %v40 = vpop.xlane.xlu0 %39
      %v41 = vrcp.pop 32.0
      %v42 = vmul.f32 %v37, %v41
      %v43 = vmul.f32 %v40, %v41
      %v44 = vsub.f32 %v32, %v42
      %v45 = vsub.f32 %v33, %v43
      %v46 = vmul.f32 %v44, %v44
      %v47 = vmul.f32 %v45, %v45
      %v48 = vsel %vm34, %v46, 0.0
      %49 = vadd.xlane.f32.xlu0 %v48
      %v50 = vpop.xlane.xlu0 %49
      %v51 = vsel %vm34, %v47, 0.0
      %52 = vadd.xlane.f32.xlu0 %v51
      %v53 = vpop.xlane.xlu0 %52
      %v54 = vrcp.pop 31.0
      %v55 = vmul.f32 %v50, %v54
      %v56 = vmul.f32 %v53, %v54
      %v57 = vrsqrt.pop %v55
      %v58 = vmul.f32 %v55, %v57
      %vm59 = vcmp.eq.f32.partialorder %v55, inf
      %v60 = vsel %vm59, %v55, %v58
      %vm61 = vcmp.eq.f32.partialorder %v55, 0.0
      %v62 = vand.u32 %v55, 2147483648
      %v63 = vsel %vm61, %v62, %v60
      %v64 = vrsqrt.pop %v56
      %v65 = vmul.f32 %v56, %v64
      %vm66 = vcmp.eq.f32.partialorder %v56, inf
      %v67 = vsel %vm66, %v56, %v65
      %vm68 = vcmp.eq.f32.partialorder %v56, 0.0
      %v69 = vand.u32 %v56, 2147483648
      %v70 = vsel %vm68, %v69, %v67
      %v71 = vadd.f32 %v63, 1e-06
      %v72 = vadd.f32 %v70, 1e-06
      %v73 = vrcp.pop %v71
      %v74 = vrcp.pop %v72
      %v75 = vld [vmem:[%s1] sm:$0x1]
      %v77 = vlaneseq
      %v78 = vshrl.u32 %v77, 7
      %v79 = vsub.s32 0, %v78
      %v80 = vrot.slane %v75, %v79
      %v82 = vmul.f32 %v80, %v44
      %v83 = vmul.f32 %v80, %v45
      %v84 = vmul.f32 %v82, %v73
      %v85 = vmul.f32 %v83, %v74
      %v86 = vld [vmem:[%s2] sm:$0x1]
      %v88 = vlaneseq
      %v89 = vshrl.u32 %v88, 7
      %v90 = vsub.s32 0, %v89
      %v91 = vrot.slane %v86, %v90
      %v93 = vadd.f32 %v84, %v91
      %v94 = vadd.f32 %v85, %v91
      %v95 = vpack.c.bf16 %v94, %v93
      %v97 = vunpack.c.l.b16 %v95
      %v98 = vunpack.c.h.b16 %v95
      %v99 = vpack.c.b16 %v97, %v97
      %v100 = vpack.c.b16 %v98, %v98
      %vm103 = vcmask 257024
      %104 = vst.msk [vmem:[#allocation2] sm:$0xf] %vm103, %v99
      %105 = vst.msk [vmem:[#allocation2 + $0x4] sm:$0xf] %vm103, %v100
      %v106 = vld [vmem:[%s0] sm:$0xff]
      %v107 = vld [vmem:[%s0 + $0x8] sm:$0xff]
      %v108 = vld [vmem:[%s6] sm:$0x1]
      %v110 = vlaneseq
      %v111 = vshrl.u32 %v110, 7
      %v112 = vsub.s32 0, %v111
      %v113 = vrot.slane %v108, %v112
      %v115 = vadd.f32 %v106, %v113
      %v116 = vadd.f32 %v107, %v113
      %117 = vst.msk [vmem:[#allocation3] sm:$0xff] %vm34, %v115
      %118 = vst.msk [vmem:[#allocation3 + $0x8] sm:$0xff] %vm34, %v116
    $region33: #{tpu_custom_call.1} parent=1 // pred_fallthru
      _
    %v119 = vld [vmem:[#allocation2] sm:$0xf]
    %v120 = vld [vmem:[#allocation2 + $0x4] sm:$0xf]
    %v121 = vld [vmem:[%s3] sm:$0xf]
    %v122 = vld [vmem:[%s3 + $0x4] sm:$0xf]
    %v123 = vld [vmem:[%s3 + $0x8] sm:$0xf]
    %v124 = vld [vmem:[%s3 + $0xc] sm:$0xf]
    %v125 = vld [vmem:[%s4] sm:$0x1]
    %v127 = vlaneseq
    %v128 = vshrl.u32 %v127, 7
    %v129 = vsub.s32 0, %v128
    %v130 = vrot.slane %v125, %v129
    %v134 = vunpack.c.l.b16 %v119
    %v135 = vunpack.c.l.b16 %v120
    %v136 = vpack.c.b16 %v135, %v134
    %v141 = vunpack.c.l.b16 %v121
    %v142 = vunpack.c.l.b16 %v122
    %v143 = vunpack.c.l.b16 %v123
    %v144 = vunpack.c.l.b16 %v124
    %v145 = vpack.c.b16 %v142, %v141
    %v146 = vpack.c.b16 %v144, %v143
    %vm149 = vcmask 261120
    %v151 = vsel %vm149, %v136, 0
    %153 = vmatprep.subr.bf16.mxu0 0
    %154 = vmatpush1.bf16.msra.mxu0 0
    %155 = vmatprep.subr.bf16.mxu0 0
    %156 = vmatpush1.bf16.msra.mxu0 0
    %157 = vmatprep.subr.bf16.mxu0 0
    %158 = vmatpush1.bf16.msra.mxu0 0
    %159 = vmatprep.subr.bf16.mxu0 0
    %160 = vmatpush1.bf16.msra.mxu0 0
    %161 = vmatprep.subr.bf16.mxu0 0
    %162 = vmatpush1.bf16.msra.mxu0 0
    %163 = vmatprep.subr.bf16.mxu0 0
    %164 = vmatpush1.bf16.msra.mxu0 0
    %165 = vmatprep.subr.bf16.mxu0 0
    %166 = vmatpush1.bf16.msra.mxu0 %v146
    %167 = vmatprep.subr.bf16.mxu0 0
    %168 = vmatpush1.bf16.msra.mxu0 %v145
    %169 = vmatprep.subr.bf16.mxu0 0
    %170 = vmatpush2.bf16.msra.mxu0 0
    %171 = vmatprep.subr.bf16.mxu0 0
    %172 = vmatpush2.bf16.msra.mxu0 0
    %173 = vmatprep.subr.bf16.mxu0 0
    %174 = vmatpush2.bf16.msra.mxu0 0
    %175 = vmatprep.subr.bf16.mxu0 0
    %176 = vmatpush2.bf16.msra.mxu0 0
    %177 = vmatprep.subr.bf16.mxu0 0
    %178 = vmatpush2.bf16.msra.mxu0 0
    %179 = vmatprep.subr.bf16.mxu0 0
    %180 = vmatpush2.bf16.msra.mxu0 0
    %181 = vmatprep.subr.bf16.mxu0 0
    %182 = vmatpush2.bf16.msra.mxu0 0
    %183 = vmatprep.subr.bf16.mxu0 0
    %184 = vmatpush2.bf16.msra.mxu0 0
    %185 = vmatprep.mubr.bf16.mxu0 0
    %186 = vmatmul.mubr.bf16.gmra.mxu0 %v151
    %v187 = vpop.f32.mrf.mxu0
    %v188 = vadd.f32 %v130, %v187
    %v189 = vpop.f32.mrf.mxu0
    %v190 = vpop.f32.mrf.mxu0
    %v191 = vadd.f32 %v130, %v190
    %v192 = vpop.f32.mrf.mxu0
    %193 = vdwg.mxu0
    %v194 = vmax.f32 %v188, 0.0
    %v195 = vmax.f32 %v191, 0.0
    %v196 = vld [vmem:[#allocation3] sm:$0xff]
    %v197 = vld [vmem:[#allocation3 + $0x8] sm:$0xff]
    %v198 = vpack.c.bf16 %v195, %v194
    %v199 = vld [vmem:[%s5] sm:$0xf]
    %v200 = vld [vmem:[%s5 + $0x4] sm:$0xf]
    %v201 = vld [vmem:[%s5 + $0x8] sm:$0xf]
    %v202 = vld [vmem:[%s5 + $0xc] sm:$0xf]
    %v203 = vld [vmem:[%s5 + $0x10] sm:$0xf]
    %v204 = vld [vmem:[%s5 + $0x14] sm:$0xf]
    %v205 = vld [vmem:[%s5 + $0x18] sm:$0xf]
    %v206 = vld [vmem:[%s5 + $0x1c] sm:$0xf]
    %v207 = vld [vmem:[%s5 + $0x20] sm:$0xf]
    %v208 = vld [vmem:[%s5 + $0x24] sm:$0xf]
    %v209 = vld [vmem:[%s5 + $0x28] sm:$0xf]
    %v210 = vld [vmem:[%s5 + $0x2c] sm:$0xf]
    %v211 = vld [vmem:[%s5 + $0x30] sm:$0xf]
    %v212 = vld [vmem:[%s5 + $0x34] sm:$0xf]
    %v213 = vld [vmem:[%s5 + $0x38] sm:$0xf]
    %v214 = vld [vmem:[%s5 + $0x3c] sm:$0xf]
    %v231 = vunpack.c.l.b16 %v199
    %v232 = vunpack.c.l.b16 %v200
    %v233 = vunpack.c.l.b16 %v201
    %v234 = vunpack.c.l.b16 %v202
    %v235 = vunpack.c.l.b16 %v203
    %v236 = vunpack.c.l.b16 %v204
    %v237 = vunpack.c.l.b16 %v205
    %v238 = vunpack.c.l.b16 %v206
    %v239 = vunpack.c.l.b16 %v207
    %v240 = vunpack.c.l.b16 %v208
    %v241 = vunpack.c.l.b16 %v209
    %v242 = vunpack.c.l.b16 %v210
    %v243 = vunpack.c.l.b16 %v211
    %v244 = vunpack.c.l.b16 %v212
    %v245 = vunpack.c.l.b16 %v213
    %v246 = vunpack.c.l.b16 %v214
    %v247 = vpack.c.b16 %v232, %v231
    %v248 = vpack.c.b16 %v234, %v233
    %v249 = vpack.c.b16 %v236, %v235
    %v250 = vpack.c.b16 %v238, %v237
    %v251 = vpack.c.b16 %v240, %v239
    %v252 = vpack.c.b16 %v242, %v241
    %v253 = vpack.c.b16 %v244, %v243
    %v254 = vpack.c.b16 %v246, %v245
    %263 = vmatprep.subr.bf16.mxu0 0
    %264 = vmatpush1.bf16.msra.mxu0 %v254
    %265 = vmatprep.subr.bf16.mxu0 0
    %266 = vmatpush1.bf16.msra.mxu0 %v253
    %267 = vmatprep.subr.bf16.mxu0 0
    %268 = vmatpush1.bf16.msra.mxu0 %v252
    %269 = vmatprep.subr.bf16.mxu0 0
    %270 = vmatpush1.bf16.msra.mxu0 %v251
    %271 = vmatprep.subr.bf16.mxu0 0
    %272 = vmatpush1.bf16.msra.mxu0 %v250
    %273 = vmatprep.subr.bf16.mxu0 0
    %274 = vmatpush1.bf16.msra.mxu0 %v249
    %275 = vmatprep.subr.bf16.mxu0 0
    %276 = vmatpush1.bf16.msra.mxu0 %v248
    %277 = vmatprep.subr.bf16.mxu0 0
    %278 = vmatpush1.bf16.msra.mxu0 %v247
    %279 = vmatprep.subr.bf16.mxu0 0
    %280 = vmatpush2.bf16.msra.mxu0 0
    %281 = vmatprep.subr.bf16.mxu0 0
    %282 = vmatpush2.bf16.msra.mxu0 0
    %283 = vmatprep.subr.bf16.mxu0 0
    %284 = vmatpush2.bf16.msra.mxu0 0
    %285 = vmatprep.subr.bf16.mxu0 0
    %286 = vmatpush2.bf16.msra.mxu0 0
    %287 = vmatprep.subr.bf16.mxu0 0
    %288 = vmatpush2.bf16.msra.mxu0 0
    %289 = vmatprep.subr.bf16.mxu0 0
    %290 = vmatpush2.bf16.msra.mxu0 0
    %291 = vmatprep.subr.bf16.mxu0 0
    %292 = vmatpush2.bf16.msra.mxu0 0
    %293 = vmatprep.subr.bf16.mxu0 0
    %294 = vmatpush2.bf16.msra.mxu0 0
    %295 = vmatprep.mubr.bf16.mxu0 0
    %296 = vmatmul.mubr.bf16.gmra.mxu0 %v198
    %v297 = vpop.f32.mrf.mxu0
    %v298 = vadd.f32 0.0, %v297
    %v299 = vpop.f32.mrf.mxu0
    %v300 = vpop.f32.mrf.mxu0
    %v301 = vadd.f32 0.0, %v300
    %v302 = vpop.f32.mrf.mxu0
    %303 = vdwg.mxu0
    %v304 = vadd.f32 %v196, %v298
    %v305 = vadd.f32 %v197, %v301
    %306 = vst.msk [vmem:[#allocation3] sm:$0xff] %vm149, %v304
    %307 = vst.msk [vmem:[#allocation3 + $0x8] sm:$0xff] %vm149, %v305
    // Predicated region
    $region34: #{tpu_custom_call.1} parent=1 // pred_check
      _
    $region35: #{tpu_custom_call.1} parent=1 // pred_check_branch
      %309 = sbr.rel (0) target = $region37
    $region36: #{tpu_custom_call.1} parent=1 // pred_region
      %s311 = ssub.s32 256, 256
      %312 = vsyncadd [#allocation4], %s311
      %s313 = sshll.u32 [#allocation3], 4
      %s314 = int_to_ptr.vmem [resolvable:$true] %s313
      %319 = dma.vmem_to_hbm [thread:$0]  %s314, 256, %s7, [#allocation4], 128, 128, 8
    $region37: #{tpu_custom_call.1} parent=1 // pred_fallthru
      _
    // Predicated region
    $region38: #{tpu_custom_call.1} parent=1 // pred_check
      _
    $region39: #{tpu_custom_call.1} parent=1 // pred_check_branch
      %321 = sbr.rel (0) target = $region41
    $region40: #{tpu_custom_call.1} parent=1 // pred_region
      %322 = dma.done [#allocation4], 256
    $region41: #{tpu_custom_call.1} parent=1 // pred_fallthru
      _
    %323 = vsyncpa [#allocation4], 1

</llo_original>
